<compile_context>
chip_gen: v5e
topology: v5e:2x2
jax: 0.10.0
libtpu: 0.0.40
codegen_flags: <defaults>
</compile_context>

<pallas_src>
import functools
import math

import jax
import jax.numpy as jnp
from jax.experimental import pallas as pl
from jax.experimental.pallas import tpu as pltpu


# ----------------------------------------------------------------------------
# Buffer construction (torch __init__ equivalent).  NOTE: the reference module
# uses math.log(1000) -- kept verbatim.
# ----------------------------------------------------------------------------
def make_pos_embedding(emb_size: int, maxlen: int) -> jnp.ndarray:
    den = jnp.exp(-jnp.arange(0, emb_size, 2, dtype=jnp.float32)
                  * math.log(1000.0) / emb_size)                      # (E/2,)
    pos = jnp.arange(0, maxlen, dtype=jnp.float32).reshape(maxlen, 1)  # (L,1)
    ang = pos * den                                                    # (L,E/2)
    pe = jnp.zeros((maxlen, emb_size), dtype=jnp.float32)
    pe = pe.at[:, 0::2].set(jnp.sin(ang))
    pe = pe.at[:, 1::2].set(jnp.cos(ang))
    return pe[:, None, :]                                              # (L,1,E)


# ----------------------------------------------------------------------------
# Kernels
# ----------------------------------------------------------------------------
def _pe_add_kernel(x_ref, pos_ref, o_ref):
    # x_ref: (ts, B, E) VMEM tile, pos_ref: (ts, E) VMEM tile (broadcast on batch)
    pos = pos_ref[...][:, None, :]
    o_ref[...] = (x_ref[...] + pos).astype(o_ref.dtype)


def _pe_add_dropout_kernel(threshold_u32, scale, x_ref, pos_ref, bits_ref, o_ref):
    # Inverted dropout: keep with prob 1-p, scale kept values by 1/(1-p).
    # Mask = raw uint32 bits >= uint32(round(p * 2**32))  (exact Bernoulli(1-p)).
    y = x_ref[...] + pos_ref[...][:, None, :]
    keep = bits_ref[...] >= jnp.uint32(threshold_u32)
    o_ref[...] = jnp.where(keep, y * jnp.float32(scale),
                           jnp.float32(0.0)).astype(o_ref.dtype)


# ----------------------------------------------------------------------------
# Tile sizing: largest divisor of S whose double-buffered VMEM footprint fits
# the budget (prefer multiples of 8 for clean sublane tiling when ts < S).
# ----------------------------------------------------------------------------
def _pick_block_seq(S, B, E, big_streams, *, budget_bytes=24 << 20, itemsize=4):
    per_row = 2 * (big_streams * B * E + E) * itemsize   # 2x for double-buffering
    max_ts = max(1, budget_bytes // per_row)
    if S <= max_ts:
        return S
    best = 1
    for d in range(1, int(min(S, max_ts)) + 1):
        if S % d == 0 and d % 8 == 0:
            best = max(best, d)
    if best == 1:                                          # fallback: any divisor
        for d in range(1, int(min(S, max_ts)) + 1):
            if S % d == 0:
                best = max(best, d)
    return best


# ----------------------------------------------------------------------------
# Forward wrapper
# ----------------------------------------------------------------------------
def positional_encoding_forward(token_embedding: jnp.ndarray,
                                pos_embedding: jnp.ndarray,
                                dropout_p: float,
                                *,
                                rng_key=None,
                                block_seq: int | None = None,
                                donate_input: bool = False) -> jnp.ndarray:
    """dropout(token_embedding + pos_embedding[:S]) via a Pallas TPU kernel.

    token_embedding: (S, B, E) float32
    pos_embedding:   (maxlen, 1, E) or (maxlen, E) float32, maxlen >= S
    """
    S, B, E = token_embedding.shape
    pe2d = pos_embedding.reshape(pos_embedding.shape[0], -1)[:S]      # (S, E)
    assert pe2d.shape == (S, E)

    p = float(dropout_p)
    if p >= 1.0:                                    # torch zeroes the output
        return jnp.zeros_like(token_embedding)
    use_dropout = p > 0.0
    if use_dropout and rng_key is None:
        raise ValueError("rng_key is required when dropout_p > 0")

    big_streams = 3 if use_dropout else 2           # x (+bits) + out tiles
    ts = block_seq if block_seq is not None else _pick_block_seq(S, B, E, big_streams)
    assert S % ts == 0, "block_seq must divide seq_len"
    grid = (S // ts,)

    x_spec = pl.BlockSpec((ts, B, E), lambda i: (i, 0, 0))
    pos_spec = pl.BlockSpec((ts, E), lambda i: (i, 0))
    out_spec = pl.BlockSpec((ts, B, E), lambda i: (i, 0, 0))

    compiler_params = pltpu.CompilerParams(
        dimension_semantics=("parallel",),          # independent seq tiles
        vmem_limit_bytes=32 * 1024 * 1024,
    )
    io_aliases = {0: 0} if donate_input else {}

    if not use_dropout:
        return pl.pallas_call(
            _pe_add_kernel,
            out_shape=jax.ShapeDtypeStruct((S, B, E), token_embedding.dtype),
            grid_spec=pltpu.PrefetchScalarGridSpec(
                num_scalar_prefetch=0, grid=grid,
                in_specs=[x_spec, pos_spec],
                out_specs=out_spec),
            compiler_params=compiler_params,
            input_output_aliases=io_aliases,
        )(token_embedding, pe2d)

    # Dropout path: random uint32 bits streamed in, thresholded in-kernel.
    bits = jax.random.bits(rng_key, (S, B, E), dtype=jnp.uint32)
    threshold = min(int(round(p * (1 << 32))), (1 << 32) - 1)
    scale = 1.0 / (1.0 - p)
    kernel = functools.partial(_pe_add_dropout_kernel, threshold, scale)
    bits_spec = pl.BlockSpec((ts, B, E), lambda i: (i, 0, 0))

    return pl.pallas_call(
        kernel,
        out_shape=jax.ShapeDtypeStruct((S, B, E), token_embedding.dtype),
        grid_spec=pltpu.PrefetchScalarGridSpec(
            num_scalar_prefetch=0, grid=grid,
            in_specs=[x_spec, pos_spec, bits_spec],
            out_specs=out_spec),
        compiler_params=compiler_params,
        input_output_aliases=io_aliases,
    )(token_embedding, pe2d, bits)


# ----------------------------------------------------------------------------
# Demo / self-check
# ----------------------------------------------------------------------------
if __name__ == "__main__":
    SEQ, BATCH, EMB = 8, 2, 32
    MAXLEN = 64
    DROPOUT = 0.1

    key = jax.random.PRNGKey(0)
    kx, kd = jax.random.split(key)
    x = jax.random.normal(kx, (SEQ, BATCH, EMB), dtype=jnp.float32)
    pos_emb = make_pos_embedding(EMB, MAXLEN)                 # (MAXLEN, 1, EMB)

    # 1) Eval-style check (dropout=0.0): must equal x + pos exactly.
    out_eval = positional_encoding_forward(x, pos_emb, 0.0)
    jax.block_until_ready(out_eval)
    ref = x + pos_emb[:SEQ]
    assert out_eval.shape == (SEQ, BATCH, EMB)
    assert jnp.allclose(out_eval, ref, atol=1e-6), "mismatch vs reference add"

    # 2) Training-style call with dropout.
    out_train = positional_encoding_forward(x, pos_emb, DROPOUT, rng_key=kd)
    jax.block_until_ready(out_train)
    assert out_train.shape == (SEQ, BATCH, EMB)
    # Kept elements must equal (x + pos) / (1 - p); dropped elements are 0.
    scaled_ref = ref / (1.0 - DROPOUT)
    kept = out_train != 0
    assert jnp.allclose(jnp.where(kept, out_train, scaled_ref), scaled_ref,
                        atol=1e-5), "dropout output values inconsistent"

    print("KERNEL_OK")
</pallas_src>

<mosaic_0001>
module attributes {stable_mosaic.version = 11 : i64} {
  func.func @_pe_add_kernel(%arg0: i32, %arg1: memref<8x2x32xf32, #tpu.memory_space<vmem>>, %arg2: memref<8x32xf32, #tpu.memory_space<vmem>>, %arg3: memref<8x2x32xf32, #tpu.memory_space<vmem>>) attributes {dimension_semantics = [#tpu.dimension_semantics<parallel>], iteration_bounds = array<i64: 1>, scalar_prefetch = 0 : i64, scratch_operands = 0 : i64, tpu.core_type = #tpu.core_type<tc>, window_params = [{transform_indices = @transform_0, window_bounds = array<i64: 8, 2, 32>}, {transform_indices = @transform_1, window_bounds = array<i64: 8, 32>}, {transform_indices = @transform_2, window_bounds = array<i64: 8, 2, 32>}]} {
    %c0 = arith.constant 0 : index
    %c0_0 = arith.constant 0 : index
    %0 = vector.load %arg2[%c0, %c0_0] : memref<8x32xf32, #tpu.memory_space<vmem>>, vector<8x32xf32>
    %1 = vector.shape_cast %0 : vector<8x32xf32> to vector<8x1x32xf32>
    %c0_1 = arith.constant 0 : index
    %c0_2 = arith.constant 0 : index
    %c0_3 = arith.constant 0 : index
    %2 = vector.load %arg1[%c0_1, %c0_2, %c0_3] : memref<8x2x32xf32, #tpu.memory_space<vmem>>, vector<8x2x32xf32>
    %3 = vector.broadcast %1 : vector<8x1x32xf32> to vector<8x2x32xf32>
    %4 = arith.addf %2, %3 : vector<8x2x32xf32>
    %c0_4 = arith.constant 0 : index
    %c0_5 = arith.constant 0 : index
    %c0_6 = arith.constant 0 : index
    %5 = vector.load %arg3[%c0_4, %c0_5, %c0_6] : memref<8x2x32xf32, #tpu.memory_space<vmem>>, vector<8x2x32xf32>
    tpu.vector_store %arg3[%c0_4, %c0_5, %c0_6], %4 {strides = array<i32>} : memref<8x2x32xf32, #tpu.memory_space<vmem>>, vector<8x2x32xf32>,
    return
  }
  func.func @transform_0(%arg0: i32) -> (i32, i32, i32) {
    %c0_i32 = arith.constant 0 : i32
    %c0_i32_0 = arith.constant 0 : i32
    %c0_i32_1 = arith.constant 0 : i32
    return %arg0, %c0_i32, %c0_i32_0 : i32, i32, i32
  }
  func.func @transform_1(%arg0: i32) -> (i32, i32) {
    %c0_i32 = arith.constant 0 : i32
    %c0_i32_0 = arith.constant 0 : i32
    return %arg0, %c0_i32 : i32, i32
  }
  func.func @transform_2(%arg0: i32) -> (i32, i32, i32) {
    %c0_i32 = arith.constant 0 : i32
    %c0_i32_0 = arith.constant 0 : i32
    %c0_i32_1 = arith.constant 0 : i32
    return %arg0, %c0_i32, %c0_i32_0 : i32, i32, i32
  }
}

</mosaic_0001>

<llo_original>
// kernel: tpu_custom_call.1
$region0: #{tpu_custom_call.1}
  #allocation0 [shape = 'u32[]', space=smem, size = 0x4, offset = 0x4, fixed_abs, tag = 'smem constant byte address 0x4 - core index']
  #allocation1 [shape = 'u32[72,128]{1,0:T(1,128)}', space=vmem, size = 0x9000, scoped, tag = 'internal scratch']
  %s0 = inlined_call_operand.hbm [shape: f32[8,2,32], index: 0, kind: input, shape index: {}]
  %s1 = inlined_call_operand.hbm [shape: f32[8,32], index: 1, kind: input, shape index: {}]
  %s2 = inlined_call_operand.hbm [shape: f32[8,2,32], index: 2, kind: output, shape index: {}]
  %s3 = sld [smem:[#allocation0]]
  $region26: #{tpu_custom_call.1} parent=0
    _
  %s5 = ssub.s32 1, %s3
  %s6 = scalar_select 0, %s5, %s3
  $region1: #{tpu_custom_call.1} parent=0
    #allocation2 [shape = 'u8[8192]{0}', space=vmem, size = 0x2000, scoped, tag = 'input window, operand 0, single buffered']
    #allocation3 [shape = 's32[1]{0}', space=sflag, size = 0x4, scoped, tag = 'scoped memory for tpu_custom_call.1']
    #allocation4 [shape = 's32[1]{0}', space=sflag, size = 0x4, scoped, tag = 'scoped memory for tpu_custom_call.1']
    #allocation5 [shape = 'u8[4096]{0}', space=vmem, size = 0x1000, scoped, tag = 'input window, operand 1, single buffered']
    #allocation6 [shape = 's32[1]{0}', space=sflag, size = 0x4, scoped, tag = 'scoped memory for tpu_custom_call.1']
    #allocation7 [shape = 'u8[8192]{0}', space=vmem, size = 0x2000, scoped, tag = 'output window, operand 0, single buffered']
    %7 = vsyncpa [#allocation3], 0
    %8 = vsyncpa [#allocation6], 0
    %9 = vsyncpa [#allocation4], 0
    // Predicated region
    $region2: #{tpu_custom_call.1} parent=1 // pred_check
      _
    $region3: #{tpu_custom_call.1} parent=1 // pred_check_branch
      %11 = sbr.rel (0) target = $region5
    $region4: #{tpu_custom_call.1} parent=1 // pred_region
      %13 = vsyncadd [#allocation3], 0
      %s14 = sshll.u32 %s0, 4
      %s15 = int_to_ptr.hbm [resolvable:$true] %s14
      %s16 = sshll.u32 [#allocation2], 4
      %s17 = int_to_ptr.vmem [resolvable:$true] %s16
      %22 = dma.hbm_to_vmem [thread:$0]  %s15, 256, %s17, [#allocation3], 32, 32, 2
    $region5: #{tpu_custom_call.1} parent=1 // pred_fallthru
      _
    // Predicated region
    $region6: #{tpu_custom_call.1} parent=1 // pred_check
      _
    $region7: #{tpu_custom_call.1} parent=1 // pred_check_branch
      %24 = sbr.rel (0) target = $region9
    $region8: #{tpu_custom_call.1} parent=1 // pred_region
      %26 = vsyncadd [#allocation6], 0
      %s28 = sshll.u32 %s1, 4
      %s29 = int_to_ptr.hbm [resolvable:$true] %s28
      %s30 = sshll.u32 [#allocation5], 4
      %s31 = int_to_ptr.vmem [resolvable:$true] %s30
      %33 = dma.hbm_to_vmem [thread:$0]  %s29, 128, %s31, [#allocation6]
    $region9: #{tpu_custom_call.1} parent=1 // pred_fallthru
      _
    // Predicated region
    $region10: #{tpu_custom_call.1} parent=1 // pred_check
      _
    $region11: #{tpu_custom_call.1} parent=1 // pred_check_branch
      %35 = sbr.rel (0) target = $region13
    $region12: #{tpu_custom_call.1} parent=1 // pred_region
      %37 = dma.done [#allocation3], 256
    $region13: #{tpu_custom_call.1} parent=1 // pred_fallthru
      _
    // Predicated region
    $region14: #{tpu_custom_call.1} parent=1 // pred_check
      _
    $region15: #{tpu_custom_call.1} parent=1 // pred_check_branch
      %39 = sbr.rel (0) target = $region17
    $region16: #{tpu_custom_call.1} parent=1 // pred_region
      %41 = dma.done [#allocation6], 128
    $region17: #{tpu_custom_call.1} parent=1 // pred_fallthru
      _
    %v42 = vld [vmem:[#allocation5] sm:$0xff]
    %v44 = vrot.slane %v42, 1
    %v45 = vrot.slane %v42, 2
    %v46 = vrot.slane %v42, 3
    %v47 = vrot.slane %v42, 4
    %v48 = vrot.slane %v42, 5
    %v49 = vrot.slane %v42, 6
    %v50 = vrot.slane %v42, 7
    %v51 = vld [vmem:[#allocation2] sm:$0x3]
    %v52 = vld [vmem:[#allocation2 + $0x2] sm:$0x3]
    %v53 = vld [vmem:[#allocation2 + $0x4] sm:$0x3]
    %v54 = vld [vmem:[#allocation2 + $0x6] sm:$0x3]
    %v55 = vld [vmem:[#allocation2 + $0x8] sm:$0x3]
    %v56 = vld [vmem:[#allocation2 + $0xa] sm:$0x3]
    %v57 = vld [vmem:[#allocation2 + $0xc] sm:$0x3]
    %v58 = vld [vmem:[#allocation2 + $0xe] sm:$0x3]
    %v59 = vperm.slane %v42, 0
    %v60 = vperm.slane %v44, 0
    %v61 = vperm.slane %v45, 0
    %v62 = vperm.slane %v46, 0
    %v63 = vperm.slane %v47, 0
    %v64 = vperm.slane %v48, 0
    %v65 = vperm.slane %v49, 0
    %v66 = vperm.slane %v50, 0
    %v75 = vadd.f32 %v51, %v59
    %v76 = vadd.f32 %v52, %v60
    %v77 = vadd.f32 %v53, %v61
    %v78 = vadd.f32 %v54, %v62
    %v79 = vadd.f32 %v55, %v63
    %v80 = vadd.f32 %v56, %v64
    %v81 = vadd.f32 %v57, %v65
    %v82 = vadd.f32 %v58, %v66
    %vm83 = vcmask 254976
    %84 = vst.msk [vmem:[#allocation7] sm:$0x3] %vm83, %v75
    %85 = vst.msk [vmem:[#allocation7 + $0x2] sm:$0x3] %vm83, %v76
    %86 = vst.msk [vmem:[#allocation7 + $0x4] sm:$0x3] %vm83, %v77
    %87 = vst.msk [vmem:[#allocation7 + $0x6] sm:$0x3] %vm83, %v78
    %88 = vst.msk [vmem:[#allocation7 + $0x8] sm:$0x3] %vm83, %v79
    %89 = vst.msk [vmem:[#allocation7 + $0xa] sm:$0x3] %vm83, %v80
    %90 = vst.msk [vmem:[#allocation7 + $0xc] sm:$0x3] %vm83, %v81
    %91 = vst.msk [vmem:[#allocation7 + $0xe] sm:$0x3] %vm83, %v82
    // Predicated region
    $region18: #{tpu_custom_call.1} parent=1 // pred_check
      _
    $region19: #{tpu_custom_call.1} parent=1 // pred_check_branch
      %93 = sbr.rel (0) target = $region21
    $region20: #{tpu_custom_call.1} parent=1 // pred_region
      %95 = vsyncadd [#allocation4], 0
      %s96 = sshll.u32 [#allocation7], 4
      %s97 = int_to_ptr.vmem [resolvable:$true] %s96
      %s98 = sshll.u32 %s2, 4
      %s99 = int_to_ptr.hbm [resolvable:$true] %s98
      %104 = dma.vmem_to_hbm [thread:$0]  %s97, 256, %s99, [#allocation4], 32, 32, 2
    $region21: #{tpu_custom_call.1} parent=1 // pred_fallthru
      _
    // Predicated region
    $region22: #{tpu_custom_call.1} parent=1 // pred_check
      _
    $region23: #{tpu_custom_call.1} parent=1 // pred_check_branch
      %106 = sbr.rel (0) target = $region25
    $region24: #{tpu_custom_call.1} parent=1 // pred_region
      %108 = dma.done [#allocation4], 256
    $region25: #{tpu_custom_call.1} parent=1 // pred_fallthru
      _
    %109 = vsyncpa [#allocation3], 1
    %110 = vsyncpa [#allocation6], 1
    %111 = vsyncpa [#allocation4], 1

</llo_original>
